<compile_context>
chip_gen: v5e
topology: v5e:2x2
jax: 0.10.0
libtpu: 0.0.40
codegen_flags: <defaults>
</compile_context>

<pallas_src>
import functools

import jax
import jax.numpy as jnp
from jax import lax
from jax.experimental import pallas as pl
from jax.experimental.pallas import tpu as pltpu

LN_EPS = 1e-5


def _layer_norm(x, gamma, beta):
    # x: (R, D) f32; gamma/beta: (1, D) f32
    mu = jnp.mean(x, axis=-1, keepdims=True)
    xc = x - mu
    var = jnp.mean(xc * xc, axis=-1, keepdims=True)
    inv = lax.rsqrt(var + LN_EPS)
    return xc * inv * gamma + beta


def transformer_encoder_kernel(
    x_ref,                    # (Bt, N, D)   input block (f32)
    ln1_g_ref, ln1_b_ref,     # (1, D) f32
    wqkv_h_ref,               # (1, D, 3*hd) bf16   this head's q/k/v projection
    bqkv_h_ref,               # (1, 1, 3*hd) f32
    wo_h_ref,                 # (1, hd, D)   bf16   this head's out_proj slice
    bo_ref,                   # (1, D) f32
    ln2_g_ref, ln2_b_ref,     # (1, D) f32
    w1_ref,                   # (D, F) bf16
    b1_ref,                   # (1, F) f32
    w2_ref,                   # (F, D) bf16
    b2_ref,                   # (1, D) f32
    o_ref,                    # (Bt, N, D)   output block
    xn_ref,                   # scratch (Bt*N, D) bf16 : LayerNorm1(x) cache
    acc_ref,                  # scratch (Bt*N, D) f32  : sum_h out_h @ Wo_h
    *, num_heads,
):
    h_idx = pl.program_id(1)
    bt, n, d = x_ref.shape
    r = bt * n
    hd = d // num_heads
    scaling = float(hd) ** -0.5
    f32 = jnp.float32
    bf16 = jnp.bfloat16

    # ---------------- first head: LayerNorm1 + zero accumulator --------------
    @pl.when(h_idx == 0)
    def _init():
        x2 = x_ref[...].reshape(r, d).astype(f32)
        xn_ref[...] = _layer_norm(x2, ln1_g_ref[...], ln1_b_ref[...]).astype(bf16)
        acc_ref[...] = jnp.zeros((r, d), f32)

    # ---------------- attention for head h_idx (all Bt rows batched) ---------
    xn = xn_ref[...]                                                   # (R, D) bf16
    qkv = jnp.dot(xn, wqkv_h_ref[0],
                  preferred_element_type=f32) + bqkv_h_ref[0]          # (R, 3hd) f32
    q = (qkv[:, 0 * hd:1 * hd] * scaling).reshape(bt, n, hd).astype(bf16)
    k = qkv[:, 1 * hd:2 * hd].reshape(bt, n, hd).astype(bf16)
    v = qkv[:, 2 * hd:3 * hd].reshape(bt, n, hd).astype(bf16)

    s = jnp.einsum('bqd,bkd->bqk', q, k, preferred_element_type=f32)   # (Bt, N, N)
    m = jnp.max(s, axis=-1, keepdims=True)
    e = jnp.exp(s - m)                                                 # f32 softmax
    p = e * pl.reciprocal(jnp.sum(e, axis=-1, keepdims=True), approx=True)

    o_h = jnp.einsum('bqk,bkd->bqd', p.astype(bf16), v,
                     preferred_element_type=f32)                       # (Bt, N, hd)
    acc_ref[...] += jnp.dot(o_h.reshape(r, hd).astype(bf16), wo_h_ref[0],
                            preferred_element_type=f32)                # (R, D) f32

    # ------------- last head: out_proj bias, residual, LayerNorm2 + FFN ------
    @pl.when(h_idx == pl.num_programs(1) - 1)
    def _finalize():
        x2 = x_ref[...].reshape(r, d).astype(f32)
        x1 = x2 + acc_ref[...] + bo_ref[...]
        yn = _layer_norm(x1, ln2_g_ref[...], ln2_b_ref[...])
        h1 = jnp.dot(yn.astype(bf16), w1_ref[...],
                     preferred_element_type=f32) + b1_ref[...]
        h1 = jnp.maximum(h1, 0.0)                                      # ReLU (default act)
        h2 = jnp.dot(h1.astype(bf16), w2_ref[...],
                     preferred_element_type=f32) + b2_ref[...]
        o_ref[...] = (x1 + h2).reshape(bt, n, d).astype(o_ref.dtype)


def transformer_encoder(x, params, *, num_heads, block_b=None):
    B, N, D = x.shape
    F = params["w1"].shape[0]
    assert D % num_heads == 0
    hd = D // num_heads
    f32, bf16 = jnp.float32, jnp.bfloat16

    # Fold batch rows into one grid step so tiles are sublane/lane dense.
    # (In-kernel merges/splits of the batch axis with N require N % 8 == 0.)
    if block_b is None:
        block_b = 1
        if N % 8 == 0:
            for cand in range(B, 0, -1):
                if B % cand == 0 and cand * N <= 256:
                    block_b = cand
                    break
    # TODO(synk): on v7x (2 TensorCores) prefer block_b <= B // 2 when B >= 2
    #             so the "parallel" batch axis can feed both cores.
    assert B % block_b == 0

    # Host-side weight rearrangement (free): plain (rows,K)@(K,cols) contractions
    # inside the kernel, per-head slices for the attention weights, bf16 storage.
    wqkv_heads = (params["wqkv"].reshape(3, num_heads, hd, D)
                  .transpose(1, 3, 0, 2).reshape(num_heads, D, 3 * hd)).astype(bf16)
    bqkv_heads = (params["bqkv"].reshape(3, num_heads, hd)
                  .transpose(1, 0, 2).reshape(num_heads, 1, 3 * hd)).astype(f32)
    wo_heads = params["wo"].T.reshape(num_heads, hd, D).astype(bf16)
    w1_t = params["w1"].T.astype(bf16)           # (D, F)
    w2_t = params["w2"].T.astype(bf16)           # (F, D)

    kernel = functools.partial(transformer_encoder_kernel, num_heads=num_heads)

    def const(shape):
        return pl.BlockSpec(shape, lambda b, h: (0,) * len(shape))

    def per_head(shape):
        return pl.BlockSpec(shape, lambda b, h: (h,) + (0,) * (len(shape) - 1))

    return pl.pallas_call(
        kernel,
        out_shape=jax.ShapeDtypeStruct((B, N, D), x.dtype),
        grid_spec=pltpu.PrefetchScalarGridSpec(
            num_scalar_prefetch=0,
            grid=(B // block_b, num_heads),          # head axis = reduction (last)
            in_specs=[
                pl.BlockSpec((block_b, N, D), lambda b, h: (b, 0, 0)),   # x
                const((1, D)), const((1, D)),                            # ln1 g/b
                per_head((1, D, 3 * hd)),                                # Wqkv[h]
                per_head((1, 1, 3 * hd)),                                # bqkv[h]
                per_head((1, hd, D)),                                    # Wo[h]
                const((1, D)),                                           # bo
                const((1, D)), const((1, D)),                            # ln2 g/b
                const((D, F)), const((1, F)),                            # ffn W1 / b1
                const((F, D)), const((1, D)),                            # ffn W2 / b2
            ],
            out_specs=pl.BlockSpec((block_b, N, D), lambda b, h: (b, 0, 0)),
            scratch_shapes=[
                pltpu.VMEM((block_b * N, D), bf16),    # LayerNorm1(x) cache
                pltpu.VMEM((block_b * N, D), f32),     # per-head out_proj accumulator
            ],
        ),
        compiler_params=pltpu.CompilerParams(
            dimension_semantics=("parallel", "arbitrary"),
            vmem_limit_bytes=32 * 1024 * 1024,
        ),
    )(
        x,
        params["ln1_g"], params["ln1_b"],
        wqkv_heads, bqkv_heads, wo_heads, params["bo"],
        params["ln2_g"], params["ln2_b"],
        w1_t, params["b1"], w2_t, params["b2"],
    )


def init_params(key, embed_dim, ffn_latent_dim):
    D, F = embed_dim, ffn_latent_dim
    ks = jax.random.split(key, 4)

    def lin(k, out_f, in_f):
        bound = 1.0 / (in_f ** 0.5)
        kw, kb = jax.random.split(k)
        w = jax.random.uniform(kw, (out_f, in_f), jnp.float32, -bound, bound)
        b = jax.random.uniform(kb, (1, out_f), jnp.float32, -bound, bound)
        return w, b

    wqkv, bqkv = lin(ks[0], 3 * D, D)
    wo, bo = lin(ks[1], D, D)
    w1, b1 = lin(ks[2], F, D)
    w2, b2 = lin(ks[3], D, F)
    return {
        "ln1_g": jnp.ones((1, D), jnp.float32),
        "ln1_b": jnp.zeros((1, D), jnp.float32),
        "wqkv": wqkv, "bqkv": bqkv,
        "wo": wo, "bo": bo,
        "ln2_g": jnp.ones((1, D), jnp.float32),
        "ln2_b": jnp.zeros((1, D), jnp.float32),
        "w1": w1, "b1": b1,
        "w2": w2, "b2": b2,
    }


def reference(x, p, *, num_heads):
    # Pure-JAX reference mirroring the kernel's dtype policy
    # (bf16 matmul operands, f32 accumulation, f32 LN/softmax).
    f32, bf = jnp.float32, jnp.bfloat16

    def ln(v, g, b):
        mu = jnp.mean(v, -1, keepdims=True)
        var = jnp.mean((v - mu) ** 2, -1, keepdims=True)
        return (v - mu) / jnp.sqrt(var + LN_EPS) * g + b

    B, N, D = x.shape
    hd = D // num_heads
    xn = ln(x, p["ln1_g"], p["ln1_b"])
    qkv = jnp.dot(xn.astype(bf), p["wqkv"].T.astype(bf),
                  preferred_element_type=f32) + p["bqkv"]
    qkv = qkv.reshape(B, N, 3, num_heads, hd).transpose(0, 3, 2, 1, 4)
    q, k, v = qkv[:, :, 0], qkv[:, :, 1], qkv[:, :, 2]
    q = q * (hd ** -0.5)
    s = jnp.einsum('bhqd,bhkd->bhqk', q.astype(bf), k.astype(bf),
                   preferred_element_type=f32)
    attn = jax.nn.softmax(s, axis=-1)
    out = jnp.einsum('bhqk,bhkd->bhqd', attn.astype(bf), v.astype(bf),
                     preferred_element_type=f32)
    out = out.transpose(0, 2, 1, 3).reshape(B, N, D)
    x1 = x + jnp.dot(out.astype(bf), p["wo"].T.astype(bf),
                     preferred_element_type=f32) + p["bo"]
    yn = ln(x1, p["ln2_g"], p["ln2_b"])
    h1 = jnp.maximum(jnp.dot(yn.astype(bf), p["w1"].T.astype(bf),
                             preferred_element_type=f32) + p["b1"], 0.0)
    h2 = jnp.dot(h1.astype(bf), p["w2"].T.astype(bf),
                 preferred_element_type=f32) + p["b2"]
    return x1 + h2


if __name__ == "__main__":
    B, N, D, F, H = 2, 8, 32, 64, 4
    key = jax.random.PRNGKey(0)
    kx, kp = jax.random.split(key)
    x = jax.random.normal(kx, (B, N, D), jnp.float32)
    params = init_params(kp, D, F)

    out = transformer_encoder(x, params, num_heads=H)
    out = jax.block_until_ready(out)

    ref = reference(x, params, num_heads=H)
    assert out.shape == (B, N, D)
    max_err = float(jnp.max(jnp.abs(out - ref)))
    assert jnp.allclose(out, ref, atol=2e-2, rtol=2e-2), (
        f"mismatch vs reference (max abs err {max_err})")

    print("KERNEL_OK")
</pallas_src>

<mosaic_0001>
module attributes {stable_mosaic.version = 11 : i64} {
  func.func @transformer_encoder_kernel(%arg0: i32, %arg1: i32, %arg2: memref<2x8x32xf32, #tpu.memory_space<vmem>>, %arg3: memref<1x32xf32, #tpu.memory_space<vmem>>, %arg4: memref<1x32xf32, #tpu.memory_space<vmem>>, %arg5: memref<1x32x24xbf16, #tpu.memory_space<vmem>>, %arg6: memref<1x1x24xf32, #tpu.memory_space<vmem>>, %arg7: memref<1x8x32xbf16, #tpu.memory_space<vmem>>, %arg8: memref<1x32xf32, #tpu.memory_space<vmem>>, %arg9: memref<1x32xf32, #tpu.memory_space<vmem>>, %arg10: memref<1x32xf32, #tpu.memory_space<vmem>>, %arg11: memref<32x64xbf16, #tpu.memory_space<vmem>>, %arg12: memref<1x64xf32, #tpu.memory_space<vmem>>, %arg13: memref<64x32xbf16, #tpu.memory_space<vmem>>, %arg14: memref<1x32xf32, #tpu.memory_space<vmem>>, %arg15: memref<2x8x32xf32, #tpu.memory_space<vmem>>, %arg16: memref<16x32xbf16, #tpu.memory_space<vmem>>, %arg17: memref<16x32xf32, #tpu.memory_space<vmem>>) attributes {dimension_semantics = [#tpu.dimension_semantics<parallel>, #tpu.dimension_semantics<arbitrary>], iteration_bounds = array<i64: 1, 4>, scalar_prefetch = 0 : i64, scratch_operands = 2 : i64, tpu.core_type = #tpu.core_type<tc>, window_params = [{transform_indices = @transform_0, window_bounds = array<i64: 2, 8, 32>}, {pipeline_mode = #tpu.pipeline_mode<synchronous>, transform_indices = @transform_1, window_bounds = array<i64: 1, 32>}, {pipeline_mode = #tpu.pipeline_mode<synchronous>, transform_indices = @transform_2, window_bounds = array<i64: 1, 32>}, {transform_indices = @transform_3, window_bounds = array<i64: 1, 32, 24>}, {transform_indices = @transform_4, window_bounds = array<i64: 1, 1, 24>}, {transform_indices = @transform_5, window_bounds = array<i64: 1, 8, 32>}, {pipeline_mode = #tpu.pipeline_mode<synchronous>, transform_indices = @transform_6, window_bounds = array<i64: 1, 32>}, {pipeline_mode = #tpu.pipeline_mode<synchronous>, transform_indices = @transform_7, window_bounds = array<i64: 1, 32>}, {pipeline_mode = #tpu.pipeline_mode<synchronous>, transform_indices = @transform_8, window_bounds = array<i64: 1, 32>}, {pipeline_mode = #tpu.pipeline_mode<synchronous>, transform_indices = @transform_9, window_bounds = array<i64: 32, 64>}, {pipeline_mode = #tpu.pipeline_mode<synchronous>, transform_indices = @transform_10, window_bounds = array<i64: 1, 64>}, {pipeline_mode = #tpu.pipeline_mode<synchronous>, transform_indices = @transform_11, window_bounds = array<i64: 64, 32>}, {pipeline_mode = #tpu.pipeline_mode<synchronous>, transform_indices = @transform_12, window_bounds = array<i64: 1, 32>}, {transform_indices = @transform_13, window_bounds = array<i64: 2, 8, 32>}]} {
    %c0_i32 = arith.constant 0 : i32
    %0 = arith.cmpi eq, %arg1, %c0_i32 : i32
    %1 = arith.extui %0 : i1 to i32
    %c0_i32_0 = arith.constant 0 : i32
    %2 = arith.cmpi ne, %1, %c0_i32_0 : i32
    scf.if %2 {
      %c0_22 = arith.constant 0 : index
      %c0_23 = arith.constant 0 : index
      %c0_24 = arith.constant 0 : index
      %46 = vector.load %arg2[%c0_22, %c0_23, %c0_24] : memref<2x8x32xf32, #tpu.memory_space<vmem>>, vector<2x8x32xf32>
      %47 = vector.shape_cast %46 : vector<2x8x32xf32> to vector<16x32xf32>
      %c0_25 = arith.constant 0 : index
      %c0_26 = arith.constant 0 : index
      %48 = vector.load %arg3[%c0_25, %c0_26] : memref<1x32xf32, #tpu.memory_space<vmem>>, vector<1x32xf32>
      %c0_27 = arith.constant 0 : index
      %c0_28 = arith.constant 0 : index
      %49 = vector.load %arg4[%c0_27, %c0_28] : memref<1x32xf32, #tpu.memory_space<vmem>>, vector<1x32xf32>
      %cst_29 = arith.constant dense<0.000000e+00> : vector<16xf32>
      %50 = vector.multi_reduction <add>, %47, %cst_29 [1] : vector<16x32xf32> to vector<16xf32>
      %51 = vector.shape_cast %50 : vector<16xf32> to vector<16x1xf32>
      %cst_30 = arith.constant 3.200000e+01 : f32
      %52 = vector.broadcast %cst_30 : f32 to vector<16x1xf32>
      %53 = arith.divf %51, %52 : vector<16x1xf32>
      %54 = vector.broadcast %53 : vector<16x1xf32> to vector<16x32xf32>
      %55 = arith.subf %47, %54 : vector<16x32xf32>
      %56 = arith.mulf %55, %55 : vector<16x32xf32>
      %cst_31 = arith.constant dense<0.000000e+00> : vector<16xf32>
      %57 = vector.multi_reduction <add>, %56, %cst_31 [1] : vector<16x32xf32> to vector<16xf32>
      %58 = vector.shape_cast %57 : vector<16xf32> to vector<16x1xf32>
      %cst_32 = arith.constant 3.200000e+01 : f32
      %59 = vector.broadcast %cst_32 : f32 to vector<16x1xf32>
      %60 = arith.divf %58, %59 : vector<16x1xf32>
      %cst_33 = arith.constant 9.99999974E-6 : f32
      %61 = vector.broadcast %cst_33 : f32 to vector<16x1xf32>
      %62 = arith.addf %60, %61 : vector<16x1xf32>
      %63 = math.rsqrt %62 : vector<16x1xf32>
      %64 = vector.broadcast %63 : vector<16x1xf32> to vector<16x32xf32>
      %65 = arith.mulf %55, %64 : vector<16x32xf32>
      %66 = vector.broadcast %48 : vector<1x32xf32> to vector<16x32xf32>
      %67 = arith.mulf %65, %66 : vector<16x32xf32>
      %68 = vector.broadcast %49 : vector<1x32xf32> to vector<16x32xf32>
      %69 = arith.addf %67, %68 : vector<16x32xf32>
      %70 = arith.truncf %69 : vector<16x32xf32> to vector<16x32xbf16>
      %c0_34 = arith.constant 0 : index
      %c0_35 = arith.constant 0 : index
      %71 = vector.load %arg16[%c0_34, %c0_35] : memref<16x32xbf16, #tpu.memory_space<vmem>>, vector<16x32xbf16>
      tpu.vector_store %arg16[%c0_34, %c0_35], %70 {strides = array<i32>} : memref<16x32xbf16, #tpu.memory_space<vmem>>, vector<16x32xbf16>,
      %cst_36 = arith.constant 0.000000e+00 : f32
      %72 = vector.broadcast %cst_36 : f32 to vector<16x32xf32>
      %c0_37 = arith.constant 0 : index
      %c0_38 = arith.constant 0 : index
      %73 = vector.load %arg17[%c0_37, %c0_38] : memref<16x32xf32, #tpu.memory_space<vmem>>, vector<16x32xf32>
      tpu.vector_store %arg17[%c0_37, %c0_38], %72 {strides = array<i32>} : memref<16x32xf32, #tpu.memory_space<vmem>>, vector<16x32xf32>,
    } else {
    }
    %c0 = arith.constant 0 : index
    %c0_1 = arith.constant 0 : index
    %3 = vector.load %arg16[%c0, %c0_1] : memref<16x32xbf16, #tpu.memory_space<vmem>>, vector<16x32xbf16>
    %c0_2 = arith.constant 0 : index
    %c0_3 = arith.constant 0 : index
    %c0_4 = arith.constant 0 : index
    %4 = vector.load %arg5[%c0_2, %c0_3, %c0_4] : memref<1x32x24xbf16, #tpu.memory_space<vmem>>, vector<1x32x24xbf16>
    %5 = vector.shape_cast %4 : vector<1x32x24xbf16> to vector<32x24xbf16>
    %cst = arith.constant dense<0.000000e+00> : vector<16x24xf32>
    %6 = tpu.matmul %3, %5, %cst {dimension_numbers = #tpu.dot_dimension_numbers<[1], [0], [0], [1], [0, 0, 1, 1], [], []>} : vector<16x32xbf16>, vector<32x24xbf16>, vector<16x24xf32> -> vector<16x24xf32>
    %c0_5 = arith.constant 0 : index
    %c0_6 = arith.constant 0 : index
    %c0_7 = arith.constant 0 : index
    %7 = vector.load %arg6[%c0_5, %c0_6, %c0_7] : memref<1x1x24xf32, #tpu.memory_space<vmem>>, vector<1x1x24xf32>
    %8 = vector.shape_cast %7 : vector<1x1x24xf32> to vector<1x24xf32>
    %9 = vector.broadcast %8 : vector<1x24xf32> to vector<16x24xf32>
    %10 = arith.addf %6, %9 : vector<16x24xf32>
    %11 = vector.extract_strided_slice %10 {offsets = [0, 0], sizes = [16, 8], strides = [1, 1]} : vector<16x24xf32> to vector<16x8xf32>
    %cst_8 = arith.constant 0.353553385 : f32
    %12 = vector.broadcast %cst_8 : f32 to vector<16x8xf32>
    %13 = arith.mulf %11, %12 : vector<16x8xf32>
    %14 = vector.shape_cast %13 : vector<16x8xf32> to vector<2x8x8xf32>
    %15 = arith.truncf %14 : vector<2x8x8xf32> to vector<2x8x8xbf16>
    %16 = vector.extract_strided_slice %10 {offsets = [0, 8], sizes = [16, 8], strides = [1, 1]} : vector<16x24xf32> to vector<16x8xf32>
    %17 = vector.shape_cast %16 : vector<16x8xf32> to vector<2x8x8xf32>
    %18 = arith.truncf %17 : vector<2x8x8xf32> to vector<2x8x8xbf16>
    %19 = vector.extract_strided_slice %10 {offsets = [0, 16], sizes = [16, 8], strides = [1, 1]} : vector<16x24xf32> to vector<16x8xf32>
    %20 = vector.shape_cast %19 : vector<16x8xf32> to vector<2x8x8xf32>
    %21 = arith.truncf %20 : vector<2x8x8xf32> to vector<2x8x8xbf16>
    "tpu.trace_start"() <{level = 10 : i32, message = "bqd,bkd->bqk"}> : () -> ()
    %cst_9 = arith.constant dense<0.000000e+00> : vector<2x8x8xf32>
    %22 = tpu.matmul %15, %18, %cst_9 {dimension_numbers = #tpu.dot_dimension_numbers<[2], [2], [1], [1], [0, 0, 0, 1, 1, 1], [0], [0]>} : vector<2x8x8xbf16>, vector<2x8x8xbf16>, vector<2x8x8xf32> -> vector<2x8x8xf32>
    "tpu.trace_stop"() : () -> ()
    %cst_10 = arith.constant dense<0xFF800000> : vector<2x8xf32>
    %23 = vector.multi_reduction <maximumf>, %22, %cst_10 [2] : vector<2x8x8xf32> to vector<2x8xf32>
    %24 = vector.shape_cast %23 : vector<2x8xf32> to vector<2x8x1xf32>
    %25 = vector.broadcast %24 : vector<2x8x1xf32> to vector<2x8x8xf32>
    %26 = arith.subf %22, %25 : vector<2x8x8xf32>
    %27 = math.exp %26 : vector<2x8x8xf32>
    %cst_11 = arith.constant dense<0.000000e+00> : vector<2x8xf32>
    %28 = vector.multi_reduction <add>, %27, %cst_11 [2] : vector<2x8x8xf32> to vector<2x8xf32>
    %29 = vector.shape_cast %28 : vector<2x8xf32> to vector<2x8x1xf32>
    %30 = tpu.reciprocal %29 {approx = true} : vector<2x8x1xf32> -> vector<2x8x1xf32>
    %31 = vector.broadcast %30 : vector<2x8x1xf32> to vector<2x8x8xf32>
    %32 = arith.mulf %27, %31 : vector<2x8x8xf32>
    %33 = arith.truncf %32 : vector<2x8x8xf32> to vector<2x8x8xbf16>
    "tpu.trace_start"() <{level = 10 : i32, message = "bqk,bkd->bqd"}> : () -> ()
    %cst_12 = arith.constant dense<0.000000e+00> : vector<2x8x8xf32>
    %34 = tpu.matmul %33, %21, %cst_12 {dimension_numbers = #tpu.dot_dimension_numbers<[2], [1], [1], [2], [0, 0, 0, 1, 1, 2], [0], [0]>} : vector<2x8x8xbf16>, vector<2x8x8xbf16>, vector<2x8x8xf32> -> vector<2x8x8xf32>
    "tpu.trace_stop"() : () -> ()
    %c0_13 = arith.constant 0 : index
    %c0_14 = arith.constant 0 : index
    %35 = vector.load %arg17[%c0_13, %c0_14] : memref<16x32xf32, #tpu.memory_space<vmem>>, vector<16x32xf32>
    %36 = vector.shape_cast %34 : vector<2x8x8xf32> to vector<16x8xf32>
    %37 = arith.truncf %36 : vector<16x8xf32> to vector<16x8xbf16>
    %c0_15 = arith.constant 0 : index
    %c0_16 = arith.constant 0 : index
    %c0_17 = arith.constant 0 : index
    %38 = vector.load %arg7[%c0_15, %c0_16, %c0_17] : memref<1x8x32xbf16, #tpu.memory_space<vmem>>, vector<1x8x32xbf16>
    %39 = vector.shape_cast %38 : vector<1x8x32xbf16> to vector<8x32xbf16>
    %cst_18 = arith.constant dense<0.000000e+00> : vector<16x32xf32>
    %40 = tpu.matmul %37, %39, %cst_18 {dimension_numbers = #tpu.dot_dimension_numbers<[1], [0], [0], [1], [0, 0, 1, 1], [], []>} : vector<16x8xbf16>, vector<8x32xbf16>, vector<16x32xf32> -> vector<16x32xf32>
    %41 = arith.addf %35, %40 : vector<16x32xf32>
    %c0_19 = arith.constant 0 : index
    %c0_20 = arith.constant 0 : index
    %42 = vector.load %arg17[%c0_19, %c0_20] : memref<16x32xf32, #tpu.memory_space<vmem>>, vector<16x32xf32>
    tpu.vector_store %arg17[%c0_19, %c0_20], %41 {strides = array<i32>} : memref<16x32xf32, #tpu.memory_space<vmem>>, vector<16x32xf32>,
    %c3_i32 = arith.constant 3 : i32
    %43 = arith.cmpi eq, %arg1, %c3_i32 : i32
    %44 = arith.extui %43 : i1 to i32
    %c0_i32_21 = arith.constant 0 : i32
    %45 = arith.cmpi ne, %44, %c0_i32_21 : i32
    scf.if %45 {
      %c0_22 = arith.constant 0 : index
      %c0_23 = arith.constant 0 : index
      %c0_24 = arith.constant 0 : index
      %46 = vector.load %arg2[%c0_22, %c0_23, %c0_24] : memref<2x8x32xf32, #tpu.memory_space<vmem>>, vector<2x8x32xf32>
      %47 = vector.shape_cast %46 : vector<2x8x32xf32> to vector<16x32xf32>
      %c0_25 = arith.constant 0 : index
      %c0_26 = arith.constant 0 : index
      %48 = vector.load %arg17[%c0_25, %c0_26] : memref<16x32xf32, #tpu.memory_space<vmem>>, vector<16x32xf32>
      %49 = arith.addf %47, %48 : vector<16x32xf32>
      %c0_27 = arith.constant 0 : index
      %c0_28 = arith.constant 0 : index
      %50 = vector.load %arg8[%c0_27, %c0_28] : memref<1x32xf32, #tpu.memory_space<vmem>>, vector<1x32xf32>
      %51 = vector.broadcast %50 : vector<1x32xf32> to vector<16x32xf32>
      %52 = arith.addf %49, %51 : vector<16x32xf32>
      %c0_29 = arith.constant 0 : index
      %c0_30 = arith.constant 0 : index
      %53 = vector.load %arg9[%c0_29, %c0_30] : memref<1x32xf32, #tpu.memory_space<vmem>>, vector<1x32xf32>
      %c0_31 = arith.constant 0 : index
      %c0_32 = arith.constant 0 : index
      %54 = vector.load %arg10[%c0_31, %c0_32] : memref<1x32xf32, #tpu.memory_space<vmem>>, vector<1x32xf32>
      %cst_33 = arith.constant dense<0.000000e+00> : vector<16xf32>
      %55 = vector.multi_reduction <add>, %52, %cst_33 [1] : vector<16x32xf32> to vector<16xf32>
      %56 = vector.shape_cast %55 : vector<16xf32> to vector<16x1xf32>
      %cst_34 = arith.constant 3.200000e+01 : f32
      %57 = vector.broadcast %cst_34 : f32 to vector<16x1xf32>
      %58 = arith.divf %56, %57 : vector<16x1xf32>
      %59 = vector.broadcast %58 : vector<16x1xf32> to vector<16x32xf32>
      %60 = arith.subf %52, %59 : vector<16x32xf32>
      %61 = arith.mulf %60, %60 : vector<16x32xf32>
      %cst_35 = arith.constant dense<0.000000e+00> : vector<16xf32>
      %62 = vector.multi_reduction <add>, %61, %cst_35 [1] : vector<16x32xf32> to vector<16xf32>
      %63 = vector.shape_cast %62 : vector<16xf32> to vector<16x1xf32>
      %cst_36 = arith.constant 3.200000e+01 : f32
      %64 = vector.broadcast %cst_36 : f32 to vector<16x1xf32>
      %65 = arith.divf %63, %64 : vector<16x1xf32>
      %cst_37 = arith.constant 9.99999974E-6 : f32
      %66 = vector.broadcast %cst_37 : f32 to vector<16x1xf32>
      %67 = arith.addf %65, %66 : vector<16x1xf32>
      %68 = math.rsqrt %67 : vector<16x1xf32>
      %69 = vector.broadcast %68 : vector<16x1xf32> to vector<16x32xf32>
      %70 = arith.mulf %60, %69 : vector<16x32xf32>
      %71 = vector.broadcast %53 : vector<1x32xf32> to vector<16x32xf32>
      %72 = arith.mulf %70, %71 : vector<16x32xf32>
      %73 = vector.broadcast %54 : vector<1x32xf32> to vector<16x32xf32>
      %74 = arith.addf %72, %73 : vector<16x32xf32>
      %75 = arith.truncf %74 : vector<16x32xf32> to vector<16x32xbf16>
      %c0_38 = arith.constant 0 : index
      %c0_39 = arith.constant 0 : index
      %76 = vector.load %arg11[%c0_38, %c0_39] : memref<32x64xbf16, #tpu.memory_space<vmem>>, vector<32x64xbf16>
      %cst_40 = arith.constant dense<0.000000e+00> : vector<16x64xf32>
      %77 = tpu.matmul %75, %76, %cst_40 {dimension_numbers = #tpu.dot_dimension_numbers<[1], [0], [0], [1], [0, 0, 1, 1], [], []>} : vector<16x32xbf16>, vector<32x64xbf16>, vector<16x64xf32> -> vector<16x64xf32>
      %c0_41 = arith.constant 0 : index
      %c0_42 = arith.constant 0 : index
      %78 = vector.load %arg12[%c0_41, %c0_42] : memref<1x64xf32, #tpu.memory_space<vmem>>, vector<1x64xf32>
      %79 = vector.broadcast %78 : vector<1x64xf32> to vector<16x64xf32>
      %80 = arith.addf %77, %79 : vector<16x64xf32>
      %cst_43 = arith.constant 0.000000e+00 : f32
      %81 = vector.broadcast %cst_43 : f32 to vector<16x64xf32>
      %82 = arith.maximumf %80, %81 : vector<16x64xf32>
      %83 = arith.truncf %82 : vector<16x64xf32> to vector<16x64xbf16>
      %c0_44 = arith.constant 0 : index
      %c0_45 = arith.constant 0 : index
      %84 = vector.load %arg13[%c0_44, %c0_45] : memref<64x32xbf16, #tpu.memory_space<vmem>>, vector<64x32xbf16>
      %cst_46 = arith.constant dense<0.000000e+00> : vector<16x32xf32>
      %85 = tpu.matmul %83, %84, %cst_46 {dimension_numbers = #tpu.dot_dimension_numbers<[1], [0], [0], [1], [0, 0, 1, 1], [], []>} : vector<16x64xbf16>, vector<64x32xbf16>, vector<16x32xf32> -> vector<16x32xf32>
      %c0_47 = arith.constant 0 : index
      %c0_48 = arith.constant 0 : index
      %86 = vector.load %arg14[%c0_47, %c0_48] : memref<1x32xf32, #tpu.memory_space<vmem>>, vector<1x32xf32>
      %87 = vector.broadcast %86 : vector<1x32xf32> to vector<16x32xf32>
      %88 = arith.addf %85, %87 : vector<16x32xf32>
      %89 = arith.addf %52, %88 : vector<16x32xf32>
      %90 = vector.shape_cast %89 : vector<16x32xf32> to vector<2x8x32xf32>
      %c0_49 = arith.constant 0 : index
      %c0_50 = arith.constant 0 : index
      %c0_51 = arith.constant 0 : index
      %91 = vector.load %arg15[%c0_49, %c0_50, %c0_51] : memref<2x8x32xf32, #tpu.memory_space<vmem>>, vector<2x8x32xf32>
      tpu.vector_store %arg15[%c0_49, %c0_50, %c0_51], %90 {strides = array<i32>} : memref<2x8x32xf32, #tpu.memory_space<vmem>>, vector<2x8x32xf32>,
    } else {
    }
    return
  }
  func.func @transform_0(%arg0: i32, %arg1: i32) -> (i32, i32, i32) {
    %c0_i32 = arith.constant 0 : i32
    %c0_i32_0 = arith.constant 0 : i32
    %c0_i32_1 = arith.constant 0 : i32
    return %arg0, %c0_i32, %c0_i32_0 : i32, i32, i32
  }
  func.func @transform_1(%arg0: i32, %arg1: i32) -> (i32, i32) {
    %c0_i32 = arith.constant 0 : i32
    %c0_i32_0 = arith.constant 0 : i32
    %c0_i32_1 = arith.constant 0 : i32
    return %c0_i32, %c0_i32_0 : i32, i32
  }
  func.func @transform_2(%arg0: i32, %arg1: i32) -> (i32, i32) {
    %c0_i32 = arith.constant 0 : i32
    %c0_i32_0 = arith.constant 0 : i32
    %c0_i32_1 = arith.constant 0 : i32
    return %c0_i32, %c0_i32_0 : i32, i32
  }
  func.func @transform_3(%arg0: i32, %arg1: i32) -> (i32, i32, i32) {
    %c0_i32 = arith.constant 0 : i32
    %c0_i32_0 = arith.constant 0 : i32
    %c0_i32_1 = arith.constant 0 : i32
    return %arg1, %c0_i32, %c0_i32_0 : i32, i32, i32
  }
  func.func @transform_4(%arg0: i32, %arg1: i32) -> (i32, i32, i32) {
    %c0_i32 = arith.constant 0 : i32
    %c0_i32_0 = arith.constant 0 : i32
    %c0_i32_1 = arith.constant 0 : i32
    return %arg1, %c0_i32, %c0_i32_0 : i32, i32, i32
  }
  func.func @transform_5(%arg0: i32, %arg1: i32) -> (i32, i32, i32) {
    %c0_i32 = arith.constant 0 : i32
    %c0_i32_0 = arith.constant 0 : i32
    %c0_i32_1 = arith.constant 0 : i32
    return %arg1, %c0_i32, %c0_i32_0 : i32, i32, i32
  }
  func.func @transform_6(%arg0: i32, %arg1: i32) -> (i32, i32) {
    %c0_i32 = arith.constant 0 : i32
    %c0_i32_0 = arith.constant 0 : i32
    %c0_i32_1 = arith.constant 0 : i32
    return %c0_i32, %c0_i32_0 : i32, i32
  }
  func.func @transform_7(%arg0: i32, %arg1: i32) -> (i32, i32) {
    %c0_i32 = arith.constant 0 : i32
    %c0_i32_0 = arith.constant 0 : i32
    %c0_i32_1 = arith.constant 0 : i32
    return %c0_i32, %c0_i32_0 : i32, i32
  }
  func.func @transform_8(%arg0: i32, %arg1: i32) -> (i32, i32) {
    %c0_i32 = arith.constant 0 : i32
    %c0_i32_0 = arith.constant 0 : i32
    %c0_i32_1 = arith.constant 0 : i32
    return %c0_i32, %c0_i32_0 : i32, i32
  }
  func.func @transform_9(%arg0: i32, %arg1: i32) -> (i32, i32) {
    %c0_i32 = arith.constant 0 : i32
    %c0_i32_0 = arith.constant 0 : i32
    %c0_i32_1 = arith.constant 0 : i32
    return %c0_i32, %c0_i32_0 : i32, i32
  }
  func.func @transform_10(%arg0: i32, %arg1: i32) -> (i32, i32) {
    %c0_i32 = arith.constant 0 : i32
    %c0_i32_0 = arith.constant 0 : i32
    %c0_i32_1 = arith.constant 0 : i32
    return %c0_i32, %c0_i32_0 : i32, i32
  }
  func.func @transform_11(%arg0: i32, %arg1: i32) -> (i32, i32) {
    %c0_i32 = arith.constant 0 : i32
    %c0_i32_0 = arith.constant 0 : i32
    %c0_i32_1 = arith.constant 0 : i32
    return %c0_i32, %c0_i32_0 : i32, i32
  }
  func.func @transform_12(%arg0: i32, %arg1: i32) -> (i32, i32) {
    %c0_i32 = arith.constant 0 : i32
    %c0_i32_0 = arith.constant 0 : i32
    %c0_i32_1 = arith.constant 0 : i32
    return %c0_i32, %c0_i32_0 : i32, i32
  }
  func.func @transform_13(%arg0: i32, %arg1: i32) -> (i32, i32, i32) {
    %c0_i32 = arith.constant 0 : i32
    %c0_i32_0 = arith.constant 0 : i32
    %c0_i32_1 = arith.constant 0 : i32
    return %arg0, %c0_i32, %c0_i32_0 : i32, i32, i32
  }
}

</mosaic_0001>

<llo_original>
// kernel: tpu_custom_call.1
$region0: #{tpu_custom_call.1}
  #allocation0 [shape = 'u32[]', space=smem, size = 0x4, offset = 0x4, fixed_abs, tag = 'smem constant byte address 0x4 - core index']
  #allocation1 [shape = 'u32[72,128]{1,0:T(1,128)}', space=vmem, size = 0x9000, scoped, tag = 'internal scratch']
  #allocation2 [shape = 'bf16[16,32]{1,0:T(8,128)(2,1)}', space=vmem, size = 0x1000, scoped, tag = 'scratch operand']
  #allocation3 [shape = 'f32[16,32]{1,0:T(8,128)}', space=vmem, size = 0x2000, scoped, tag = 'scratch operand']
  %s0 = inlined_call_operand.vmem [shape: f32[2,8,32], index: 0, kind: input, shape index: {}]
  %s1 = inlined_call_operand.vmem [shape: f32[1,32], index: 1, kind: input, shape index: {}]
  %s2 = inlined_call_operand.vmem [shape: f32[1,32], index: 2, kind: input, shape index: {}]
  %s3 = inlined_call_operand.vmem [shape: bf16[4,32,24], index: 3, kind: input, shape index: {}]
  %s4 = inlined_call_operand.vmem [shape: f32[4,1,24], index: 4, kind: input, shape index: {}]
  %s5 = inlined_call_operand.vmem [shape: bf16[4,8,32], index: 5, kind: input, shape index: {}]
  %s6 = inlined_call_operand.vmem [shape: f32[1,32], index: 6, kind: input, shape index: {}]
  %s7 = inlined_call_operand.vmem [shape: f32[1,32], index: 7, kind: input, shape index: {}]
  %s8 = inlined_call_operand.vmem [shape: f32[1,32], index: 8, kind: input, shape index: {}]
  %s9 = inlined_call_operand.vmem [shape: bf16[32,64], index: 9, kind: input, shape index: {}]
  %s10 = inlined_call_operand.vmem [shape: f32[1,64], index: 10, kind: input, shape index: {}]
  %s11 = inlined_call_operand.vmem [shape: bf16[64,32], index: 11, kind: input, shape index: {}]
  %s12 = inlined_call_operand.vmem [shape: f32[1,32], index: 12, kind: input, shape index: {}]
  %s13 = inlined_call_operand.hbm [shape: f32[2,8,32], index: 13, kind: output, shape index: {}]
  %s14 = sld [smem:[#allocation0]]
  $region93: #{tpu_custom_call.1} parent=0
    _
  %s16 = ssub.s32 1, %s14
  %s17 = scalar_select 0, %s16, %s14
  $region1: #{tpu_custom_call.1} parent=0
    #allocation4 [shape = 'u8[8192]{0}', space=vmem, size = 0x2000, scoped, tag = 'output window, operand 0, single buffered']
    #allocation5 [shape = 's32[2]{0}', space=sflag, size = 0x8, scoped, tag = 'scoped memory for tpu_custom_call.1']
    %18 = vsyncpa [#allocation5], 0
    loop: start=0, step=1, limit=6
    $region2: #{tpu_custom_call.1} parent=1 // loop_pre_header
      _
    $region3: #{tpu_custom_call.1} parent=1 // loop_header
      %s20 = sphi 0, %s24
      %p21 = scmp.ge.s32.totalorder %s20, 6
      %s27 = sphi 0, %s39
      %s28 = sphi 0, %s35
      %s29 = sphi 0, %s27
      %s30 = sphi 0, %s28
      %s31 = sphi 0, %s29
      %s32 = sphi 0, %s30
      %s42 = sphi 0, %s44
      %s45 = sphi 0, %s42
      %s46 = sphi 0, %s45
      %s62 = sphi 0, %s46
      %s66 = sphi 0, %s66
      %s68 = sphi 0, %s66
      %s69 = sphi 0, %s68
      %s83 = sphi 0, %s69
      %s87 = sphi 0, %s87
      %s89 = sphi 0, %s87
      %s90 = sphi 0, %s89
      %s104 = sphi 0, %s90
      %s110 = sphi 0, %s112
      %s113 = sphi 0, %s110
      %s114 = sphi 0, %s113
      %s130 = sphi 0, %s114
      %s136 = sphi 0, %s138
      %s139 = sphi 0, %s136
      %s140 = sphi 0, %s139
      %s156 = sphi 0, %s140
      %s162 = sphi 0, %s164
      %s165 = sphi 0, %s162
      %s166 = sphi 0, %s165
      %s182 = sphi 0, %s166
      %s186 = sphi 0, %s186
      %s188 = sphi 0, %s186
      %s189 = sphi 0, %s188
      %s203 = sphi 0, %s189
      %s207 = sphi 0, %s207
      %s209 = sphi 0, %s207
      %s210 = sphi 0, %s209
      %s224 = sphi 0, %s210
      %s228 = sphi 0, %s228
      %s230 = sphi 0, %s228
      %s231 = sphi 0, %s230
      %s245 = sphi 0, %s231
      %s249 = sphi 0, %s249
      %s251 = sphi 0, %s249
      %s252 = sphi 0, %s251
      %s266 = sphi 0, %s252
      %s270 = sphi 0, %s270
      %s272 = sphi 0, %s270
      %s273 = sphi 0, %s272
      %s287 = sphi 0, %s273
      %s291 = sphi 0, %s291
      %s293 = sphi 0, %s291
      %s294 = sphi 0, %s293
      %s308 = sphi 0, %s294
      %s312 = sphi 0, %s312
      %s314 = sphi 0, %s312
      %s315 = sphi 0, %s314
      %s329 = sphi 0, %s315
      %s335 = sphi 0, %s337
      %s338 = sphi 0, %s335
      %s339 = sphi 0, %s338
      %s355 = sphi 0, %s339
    $region4: #{tpu_custom_call.1} parent=1 // loop_header_branch
      %23 = sbr.rel (%p21) target = $region8
    $region5: #{tpu_custom_call.1} parent=1 // loop_body
      %s25 = ssub.s32 %s20, 1
      %s26 = ssub.s32 %s20, 2
      %s33 = sadd.s32 1, %s28
      %p34 = scmp.ge.s32.totalorder %s33, 4
      %s35 = scalar_select %p34, 0, %s33
      %s36 = sadd.s32 1, %s27
      %s37 = scalar_select %p34, %s36, %s27
      %p38 = scmp.ge.s32.totalorder %s37, 1
      %s39 = scalar_select %p38, 0, %s37
      %s40 = ssub.s32 %s27, %s39
      %p41 = scmp.eq.s32.totalorder %s40, 0
      %s43 = sadd.s32 %s42, 1
      %s44 = scalar_select %p41, %s42, %s43
      %p47 = pneg %p41
      %p48 = scmp.eq.s32.totalorder %s20, 3
      %p49 = por %p47, %p48
      %p50 = scmp.ne.s32.totalorder %s42, %s45
      %p51 = scmp.eq.s32.totalorder %s20, 0
      %p52 = por %p50, %p51
      %p53 = scmp.ne.s32.totalorder %s42, %s45
      %p54 = scmp.eq.s32.totalorder %s25, 3
      %p55 = por %p53, %p54
      %p56 = scmp.ne.s32.totalorder %s45, %s46
      %p57 = scmp.eq.s32.totalorder %s25, 0
      %p58 = por %p56, %p57
      %p59 = scmp.ne.s32.totalorder %s45, %s46
      %p60 = scmp.eq.s32.totalorder %s26, 3
      %p61 = por %p59, %p60
      %p63 = scmp.ne.s32.totalorder %s46, %s62
      %p64 = scmp.eq.s32.totalorder %s26, 0
      %p65 = por %p63, %p64
      %s67 = sadd.s32 %s66, 1
      %p70 = scmp.eq.s32.totalorder %s20, 3
      %p71 = scmp.ne.s32.totalorder %s66, %s68
      %p72 = scmp.eq.s32.totalorder %s20, 0
      %p73 = por %p71, %p72
      %p74 = scmp.ne.s32.totalorder %s66, %s68
      %p75 = scmp.eq.s32.totalorder %s25, 3
      %p76 = por %p74, %p75
      %p77 = scmp.ne.s32.totalorder %s68, %s69
      %p78 = scmp.eq.s32.totalorder %s25, 0
      %p79 = por %p77, %p78
      %p80 = scmp.ne.s32.totalorder %s68, %s69
      %p81 = scmp.eq.s32.totalorder %s26, 3
      %p82 = por %p80, %p81
      %p84 = scmp.ne.s32.totalorder %s69, %s83
      %p85 = scmp.eq.s32.totalorder %s26, 0
      %p86 = por %p84, %p85
      %s88 = sadd.s32 %s87, 1
      %p91 = scmp.eq.s32.totalorder %s20, 3
      %p92 = scmp.ne.s32.totalorder %s87, %s89
      %p93 = scmp.eq.s32.totalorder %s20, 0
      %p94 = por %p92, %p93
      %p95 = scmp.ne.s32.totalorder %s87, %s89
      %p96 = scmp.eq.s32.totalorder %s25, 3
      %p97 = por %p95, %p96
      %p98 = scmp.ne.s32.totalorder %s89, %s90
      %p99 = scmp.eq.s32.totalorder %s25, 0
      %p100 = por %p98, %p99
      %p101 = scmp.ne.s32.totalorder %s89, %s90
      %p102 = scmp.eq.s32.totalorder %s26, 3
      %p103 = por %p101, %p102
      %p105 = scmp.ne.s32.totalorder %s90, %s104
      %p106 = scmp.eq.s32.totalorder %s26, 0
      %p107 = por %p105, %p106
      %s108 = ssub.s32 %s28, %s35
      %p109 = scmp.eq.s32.totalorder %s108, 0
      %s111 = sadd.s32 %s110, 1
      %s112 = scalar_select %p109, %s110, %s111
      %p115 = pneg %p109
      %p116 = scmp.eq.s32.totalorder %s20, 3
      %p117 = por %p115, %p116
      %p118 = scmp.ne.s32.totalorder %s110, %s113
      %p119 = scmp.eq.s32.totalorder %s20, 0
      %p120 = por %p118, %p119
      %p121 = scmp.ne.s32.totalorder %s110, %s113
      %p122 = scmp.eq.s32.totalorder %s25, 3
      %p123 = por %p121, %p122
      %p124 = scmp.ne.s32.totalorder %s113, %s114
      %p125 = scmp.eq.s32.totalorder %s25, 0
      %p126 = por %p124, %p125
      %p127 = scmp.ne.s32.totalorder %s113, %s114
      %p128 = scmp.eq.s32.totalorder %s26, 3
      %p129 = por %p127, %p128
      %p131 = scmp.ne.s32.totalorder %s114, %s130
      %p132 = scmp.eq.s32.totalorder %s26, 0
      %p133 = por %p131, %p132
      %s134 = ssub.s32 %s28, %s35
      %p135 = scmp.eq.s32.totalorder %s134, 0
      %s137 = sadd.s32 %s136, 1
      %s138 = scalar_select %p135, %s136, %s137
      %p141 = pneg %p135
      %p142 = scmp.eq.s32.totalorder %s20, 3
      %p143 = por %p141, %p142
      %p144 = scmp.ne.s32.totalorder %s136, %s139
      %p145 = scmp.eq.s32.totalorder %s20, 0
      %p146 = por %p144, %p145
      %p147 = scmp.ne.s32.totalorder %s136, %s139
      %p148 = scmp.eq.s32.totalorder %s25, 3
      %p149 = por %p147, %p148
      %p150 = scmp.ne.s32.totalorder %s139, %s140
      %p151 = scmp.eq.s32.totalorder %s25, 0
      %p152 = por %p150, %p151
      %p153 = scmp.ne.s32.totalorder %s139, %s140
      %p154 = scmp.eq.s32.totalorder %s26, 3
      %p155 = por %p153, %p154
      %p157 = scmp.ne.s32.totalorder %s140, %s156
      %p158 = scmp.eq.s32.totalorder %s26, 0
      %p159 = por %p157, %p158
      %s160 = ssub.s32 %s28, %s35
      %p161 = scmp.eq.s32.totalorder %s160, 0
      %s163 = sadd.s32 %s162, 1
      %s164 = scalar_select %p161, %s162, %s163
      %p167 = pneg %p161
      %p168 = scmp.eq.s32.totalorder %s20, 3
      %p169 = por %p167, %p168
      %p170 = scmp.ne.s32.totalorder %s162, %s165
      %p171 = scmp.eq.s32.totalorder %s20, 0
      %p172 = por %p170, %p171
      %p173 = scmp.ne.s32.totalorder %s162, %s165
      %p174 = scmp.eq.s32.totalorder %s25, 3
      %p175 = por %p173, %p174
      %p176 = scmp.ne.s32.totalorder %s165, %s166
      %p177 = scmp.eq.s32.totalorder %s25, 0
      %p178 = por %p176, %p177
      %p179 = scmp.ne.s32.totalorder %s165, %s166
      %p180 = scmp.eq.s32.totalorder %s26, 3
      %p181 = por %p179, %p180
      %p183 = scmp.ne.s32.totalorder %s166, %s182
      %p184 = scmp.eq.s32.totalorder %s26, 0
      %p185 = por %p183, %p184
      %s187 = sadd.s32 %s186, 1
      %p190 = scmp.eq.s32.totalorder %s20, 3
      %p191 = scmp.ne.s32.totalorder %s186, %s188
      %p192 = scmp.eq.s32.totalorder %s20, 0
      %p193 = por %p191, %p192
      %p194 = scmp.ne.s32.totalorder %s186, %s188
      %p195 = scmp.eq.s32.totalorder %s25, 3
      %p196 = por %p194, %p195
      %p197 = scmp.ne.s32.totalorder %s188, %s189
      %p198 = scmp.eq.s32.totalorder %s25, 0
      %p199 = por %p197, %p198
      %p200 = scmp.ne.s32.totalorder %s188, %s189
      %p201 = scmp.eq.s32.totalorder %s26, 3
      %p202 = por %p200, %p201
      %p204 = scmp.ne.s32.totalorder %s189, %s203
      %p205 = scmp.eq.s32.totalorder %s26, 0
      %p206 = por %p204, %p205
      %s208 = sadd.s32 %s207, 1
      %p211 = scmp.eq.s32.totalorder %s20, 3
      %p212 = scmp.ne.s32.totalorder %s207, %s209
      %p213 = scmp.eq.s32.totalorder %s20, 0
      %p214 = por %p212, %p213
      %p215 = scmp.ne.s32.totalorder %s207, %s209
      %p216 = scmp.eq.s32.totalorder %s25, 3
      %p217 = por %p215, %p216
      %p218 = scmp.ne.s32.totalorder %s209, %s210
      %p219 = scmp.eq.s32.totalorder %s25, 0
      %p220 = por %p218, %p219
      %p221 = scmp.ne.s32.totalorder %s209, %s210
      %p222 = scmp.eq.s32.totalorder %s26, 3
      %p223 = por %p221, %p222
      %p225 = scmp.ne.s32.totalorder %s210, %s224
      %p226 = scmp.eq.s32.totalorder %s26, 0
      %p227 = por %p225, %p226
      %s229 = sadd.s32 %s228, 1
      %p232 = scmp.eq.s32.totalorder %s20, 3
      %p233 = scmp.ne.s32.totalorder %s228, %s230
      %p234 = scmp.eq.s32.totalorder %s20, 0
      %p235 = por %p233, %p234
      %p236 = scmp.ne.s32.totalorder %s228, %s230
      %p237 = scmp.eq.s32.totalorder %s25, 3
      %p238 = por %p236, %p237
      %p239 = scmp.ne.s32.totalorder %s230, %s231
      %p240 = scmp.eq.s32.totalorder %s25, 0
      %p241 = por %p239, %p240
      %p242 = scmp.ne.s32.totalorder %s230, %s231
      %p243 = scmp.eq.s32.totalorder %s26, 3
      %p244 = por %p242, %p243
      %p246 = scmp.ne.s32.totalorder %s231, %s245
      %p247 = scmp.eq.s32.totalorder %s26, 0
      %p248 = por %p246, %p247
      %s250 = sadd.s32 %s249, 1
      %p253 = scmp.eq.s32.totalorder %s20, 3
      %p254 = scmp.ne.s32.totalorder %s249, %s251
      %p255 = scmp.eq.s32.totalorder %s20, 0
      %p256 = por %p254, %p255
      %p257 = scmp.ne.s32.totalorder %s249, %s251
      %p258 = scmp.eq.s32.totalorder %s25, 3
      %p259 = por %p257, %p258
      %p260 = scmp.ne.s32.totalorder %s251, %s252
      %p261 = scmp.eq.s32.totalorder %s25, 0
      %p262 = por %p260, %p261
      %p263 = scmp.ne.s32.totalorder %s251, %s252
      %p264 = scmp.eq.s32.totalorder %s26, 3
      %p265 = por %p263, %p264
      %p267 = scmp.ne.s32.totalorder %s252, %s266
      %p268 = scmp.eq.s32.totalorder %s26, 0
      %p269 = por %p267, %p268
      %s271 = sadd.s32 %s270, 1
      %p274 = scmp.eq.s32.totalorder %s20, 3
      %p275 = scmp.ne.s32.totalorder %s270, %s272
      %p276 = scmp.eq.s32.totalorder %s20, 0
      %p277 = por %p275, %p276
      %p278 = scmp.ne.s32.totalorder %s270, %s272
      %p279 = scmp.eq.s32.totalorder %s25, 3
      %p280 = por %p278, %p279
      %p281 = scmp.ne.s32.totalorder %s272, %s273
      %p282 = scmp.eq.s32.totalorder %s25, 0
      %p283 = por %p281, %p282
      %p284 = scmp.ne.s32.totalorder %s272, %s273
      %p285 = scmp.eq.s32.totalorder %s26, 3
      %p286 = por %p284, %p285
      %p288 = scmp.ne.s32.totalorder %s273, %s287
      %p289 = scmp.eq.s32.totalorder %s26, 0
      %p290 = por %p288, %p289
      %s292 = sadd.s32 %s291, 1
      %p295 = scmp.eq.s32.totalorder %s20, 3
      %p296 = scmp.ne.s32.totalorder %s291, %s293
      %p297 = scmp.eq.s32.totalorder %s20, 0
      %p298 = por %p296, %p297
      %p299 = scmp.ne.s32.totalorder %s291, %s293
      %p300 = scmp.eq.s32.totalorder %s25, 3
      %p301 = por %p299, %p300
      %p302 = scmp.ne.s32.totalorder %s293, %s294
      %p303 = scmp.eq.s32.totalorder %s25, 0
      %p304 = por %p302, %p303
      %p305 = scmp.ne.s32.totalorder %s293, %s294
      %p306 = scmp.eq.s32.totalorder %s26, 3
      %p307 = por %p305, %p306
      %p309 = scmp.ne.s32.totalorder %s294, %s308
      %p310 = scmp.eq.s32.totalorder %s26, 0
      %p311 = por %p309, %p310
      %s313 = sadd.s32 %s312, 1
      %p316 = scmp.eq.s32.totalorder %s20, 3
      %p317 = scmp.ne.s32.totalorder %s312, %s314
      %p318 = scmp.eq.s32.totalorder %s20, 0
      %p319 = por %p317, %p318
      %p320 = scmp.ne.s32.totalorder %s312, %s314
      %p321 = scmp.eq.s32.totalorder %s25, 3
      %p322 = por %p320, %p321
      %p323 = scmp.ne.s32.totalorder %s314, %s315
      %p324 = scmp.eq.s32.totalorder %s25, 0
      %p325 = por %p323, %p324
      %p326 = scmp.ne.s32.totalorder %s314, %s315
      %p327 = scmp.eq.s32.totalorder %s26, 3
      %p328 = por %p326, %p327
      %p330 = scmp.ne.s32.totalorder %s315, %s329
      %p331 = scmp.eq.s32.totalorder %s26, 0
      %p332 = por %p330, %p331
      %s333 = ssub.s32 %s27, %s39
      %p334 = scmp.eq.s32.totalorder %s333, 0
      %s336 = sadd.s32 %s335, 1
      %s337 = scalar_select %p334, %s335, %s336
      %p340 = pneg %p334
      %p341 = scmp.eq.s32.totalorder %s20, 3
      %p342 = por %p340, %p341
      %p343 = scmp.ne.s32.totalorder %s335, %s338
      %p344 = scmp.eq.s32.totalorder %s20, 0
      %p345 = por %p343, %p344
      %p346 = scmp.ne.s32.totalorder %s335, %s338
      %p347 = scmp.eq.s32.totalorder %s25, 3
      %p348 = por %p346, %p347
      %p349 = scmp.ne.s32.totalorder %s338, %s339
      %p350 = scmp.eq.s32.totalorder %s25, 0
      %p351 = por %p349, %p350
      %p352 = scmp.ne.s32.totalorder %s338, %s339
      %p353 = scmp.eq.s32.totalorder %s26, 3
      %p354 = por %p352, %p353
      %p356 = scmp.ne.s32.totalorder %s339, %s355
      %p357 = scmp.eq.s32.totalorder %s26, 0
      %p358 = por %p356, %p357
      %p359 = scmp.le.s32.totalorder 1, %s20
      %p360 = scmp.lt.s32.totalorder %s20, 5
      %p361 = pnand %p359, %p360
      %p362 = pneg %p361
      // Predicated region
      $region9: #{tpu_custom_call.1} parent=5 // pred_check
        _
      $region10: #{tpu_custom_call.1} parent=5 // pred_check_branch
        %364 = sbr.rel (%p361) target = $region12
      $region11: #{tpu_custom_call.1} parent=5 // pred_region
        %s365 = ssub.s32 %s20, 1
        // Predicated region
        $region13: #{tpu_custom_call.1} parent=11 // pred_check
          %p366 = pneg %p58
        $region14: #{tpu_custom_call.1} parent=11 // pred_check_branch
          %368 = sbr.rel (%p366) target = $region16
        $region15: #{tpu_custom_call.1} parent=11 // pred_region
          %s369 = smul.u32 2, %s29
          %p370 = scmp.lt.s32.totalorder %s369, 1
          %s371 = scalar_select %p370, %s369, 1
          %s372 = smul.addr %s371, 8
          %s373 = scalar_lea.vmem %s0, %s372
          %s374 = smul.u32 2, %s29
        $region16: #{tpu_custom_call.1} parent=11 // pred_fallthru
          _
        // Predicated region
        $region17: #{tpu_custom_call.1} parent=11 // pred_check
          %p375 = pneg %p79
        $region18: #{tpu_custom_call.1} parent=11 // pred_check_branch
          %377 = sbr.rel (%p375) target = $region20
        $region19: #{tpu_custom_call.1} parent=11 // pred_region
          _
        $region20: #{tpu_custom_call.1} parent=11 // pred_fallthru
          _
        // Predicated region
        $region21: #{tpu_custom_call.1} parent=11 // pred_check
          %p378 = pneg %p100
        $region22: #{tpu_custom_call.1} parent=11 // pred_check_branch
          %380 = sbr.rel (%p378) target = $region24
        $region23: #{tpu_custom_call.1} parent=11 // pred_region
          _
        $region24: #{tpu_custom_call.1} parent=11 // pred_fallthru
          _
        // Predicated region
        $region25: #{tpu_custom_call.1} parent=11 // pred_check
          %p381 = pneg %p199
        $region26: #{tpu_custom_call.1} parent=11 // pred_check_branch
          %383 = sbr.rel (%p381) target = $region28
        $region27: #{tpu_custom_call.1} parent=11 // pred_region
          _
        $region28: #{tpu_custom_call.1} parent=11 // pred_fallthru
          _
        // Predicated region
        $region29: #{tpu_custom_call.1} parent=11 // pred_check
          %p384 = pneg %p220
        $region30: #{tpu_custom_call.1} parent=11 // pred_check_branch
          %386 = sbr.rel (%p384) target = $region32
        $region31: #{tpu_custom_call.1} parent=11 // pred_region
          _
        $region32: #{tpu_custom_call.1} parent=11 // pred_fallthru
          _
        // Predicated region
        $region33: #{tpu_custom_call.1} parent=11 // pred_check
          %p387 = pneg %p241
        $region34: #{tpu_custom_call.1} parent=11 // pred_check_branch
          %389 = sbr.rel (%p387) target = $region36
        $region35: #{tpu_custom_call.1} parent=11 // pred_region
          _
        $region36: #{tpu_custom_call.1} parent=11 // pred_fallthru
          _
        // Predicated region
        $region37: #{tpu_custom_call.1} parent=11 // pred_check
          %p390 = pneg %p262
        $region38: #{tpu_custom_call.1} parent=11 // pred_check_branch
          %392 = sbr.rel (%p390) target = $region40
        $region39: #{tpu_custom_call.1} parent=11 // pred_region
          _
        $region40: #{tpu_custom_call.1} parent=11 // pred_fallthru
          _
        // Predicated region
        $region41: #{tpu_custom_call.1} parent=11 // pred_check
          %p393 = pneg %p283
        $region42: #{tpu_custom_call.1} parent=11 // pred_check_branch
          %395 = sbr.rel (%p393) target = $region44
        $region43: #{tpu_custom_call.1} parent=11 // pred_region
          _
        $region44: #{tpu_custom_call.1} parent=11 // pred_fallthru
          _
        // Predicated region
        $region45: #{tpu_custom_call.1} parent=11 // pred_check
          %p396 = pneg %p304
        $region46: #{tpu_custom_call.1} parent=11 // pred_check_branch
          %398 = sbr.rel (%p396) target = $region48
        $region47: #{tpu_custom_call.1} parent=11 // pred_region
          _
        $region48: #{tpu_custom_call.1} parent=11 // pred_fallthru
          _
        // Predicated region
        $region49: #{tpu_custom_call.1} parent=11 // pred_check
          %p399 = pneg %p325
        $region50: #{tpu_custom_call.1} parent=11 // pred_check_branch
          %401 = sbr.rel (%p399) target = $region52
        $region51: #{tpu_custom_call.1} parent=11 // pred_region
          _
        $region52: #{tpu_custom_call.1} parent=11 // pred_fallthru
          _
      $region12: #{tpu_custom_call.1} parent=5 // pred_fallthru
        _
      %p402 = scmp.lt.s32.totalorder %s20, 4
      // Predicated region
      $region53: #{tpu_custom_call.1} parent=5 // pred_check
        %p403 = pneg %p402
      $region54: #{tpu_custom_call.1} parent=5 // pred_check_branch
        %405 = sbr.rel (%p403) target = $region56
      $region55: #{tpu_custom_call.1} parent=5 // pred_region
        // Predicated region
        $region57: #{tpu_custom_call.1} parent=55 // pred_check
          %p406 = pneg %p120
        $region58: #{tpu_custom_call.1} parent=55 // pred_check_branch
          %408 = sbr.rel (%p406) target = $region60
        $region59: #{tpu_custom_call.1} parent=55 // pred_region
          %p409 = scmp.lt.s32.totalorder %s28, 3
          %s410 = scalar_select %p409, %s28, 3
          %s411 = smul.addr %s410, 4
          %s412 = smul.addr %s411, 4
          %s413 = scalar_lea.vmem %s3, %s412
        $region60: #{tpu_custom_call.1} parent=55 // pred_fallthru
          _
        // Predicated region
        $region61: #{tpu_custom_call.1} parent=55 // pred_check
          %p414 = pneg %p146
        $region62: #{tpu_custom_call.1} parent=55 // pred_check_branch
          %416 = sbr.rel (%p414) target = $region64
        $region63: #{tpu_custom_call.1} parent=55 // pred_region
          %p417 = scmp.lt.s32.totalorder %s28, 3
          %s418 = scalar_select %p417, %s28, 3
          %s419 = scalar_lea.vmem %s4, %s418
        $region64: #{tpu_custom_call.1} parent=55 // pred_fallthru
          _
        // Predicated region
        $region65: #{tpu_custom_call.1} parent=55 // pred_check
          %p420 = pneg %p172
        $region66: #{tpu_custom_call.1} parent=55 // pred_check_branch
          %422 = sbr.rel (%p420) target = $region68
        $region67: #{tpu_custom_call.1} parent=55 // pred_region
          %p423 = scmp.lt.s32.totalorder %s28, 3
          %s424 = scalar_select %p423, %s28, 3
          %s425 = smul.addr %s424, 4
          %s426 = scalar_lea.vmem %s5, %s425
        $region68: #{tpu_custom_call.1} parent=55 // pred_fallthru
          _
      $region56: #{tpu_custom_call.1} parent=5 // pred_fallthru
        _
      %p427 = scmp.le.s32.totalorder 1, %s20
      %p428 = scmp.lt.s32.totalorder %s20, 5
      %p429 = pnand %p427, %p428
      %p430 = pneg %p429
      // Predicated region
      $region69: #{tpu_custom_call.1} parent=5 // pred_check
        _
      $region70: #{tpu_custom_call.1} parent=5 // pred_check_branch
        %432 = sbr.rel (%p429) target = $region72
      $region71: #{tpu_custom_call.1} parent=5 // pred_region
        %s433 = ssub.s32 %s20, 1
        %s434 = smul.u32 2, %s29
        %p435 = scmp.lt.s32.totalorder %s434, 1
        %s436 = scalar_select %p435, %s434, 1
        %s437 = smul.addr %s436, 8
        %s438 = scalar_lea.vmem %s0, %s437
        %p439 = pneg %p58
        %p440 = pneg %p55
        %p441 = pneg %p79
        %p442 = pneg %p76
        %p443 = pneg %p100
        %p444 = pneg %p97
        %p445 = scmp.lt.s32.totalorder %s30, 3
        %s446 = scalar_select %p445, %s30, 3
        %s447 = smul.addr %s446, 4
        %s448 = smul.addr %s447, 4
        %s449 = scalar_lea.vmem %s3, %s448
        %p450 = pneg %p126
        %p451 = pneg %p123
        %p452 = scmp.lt.s32.totalorder %s30, 3
        %s453 = scalar_select %p452, %s30, 3
        %s454 = scalar_lea.vmem %s4, %s453
        %p455 = pneg %p152
        %p456 = pneg %p149
        %p457 = scmp.lt.s32.totalorder %s30, 3
        %s458 = scalar_select %p457, %s30, 3
        %s459 = smul.addr %s458, 4
        %s460 = scalar_lea.vmem %s5, %s459
        %p461 = pneg %p178
        %p462 = pneg %p175
        %p463 = pneg %p199
        %p464 = pneg %p196
        %p465 = pneg %p220
        %p466 = pneg %p217
        %p467 = pneg %p241
        %p468 = pneg %p238
        %p469 = pneg %p262
        %p470 = pneg %p259
        %p471 = pneg %p283
        %p472 = pneg %p280
        %p473 = pneg %p304
        %p474 = pneg %p301
        %p475 = pneg %p325
        %p476 = pneg %p322
        %p477 = pneg %p351
        %p478 = pneg %p348
        %s479 = smul.u32 2, %s29
        %p480 = scmp.lt.s32.totalorder %s479, 1
        %s481 = scalar_select %p480, %s479, 1
        %s482 = smul.addr %s481, 8
        %s483 = scalar_lea.vmem %s0, %s482
        %s484 = smul.u32 2, %s29
        %p485 = scmp.lt.s32.totalorder %s30, 3
        %s486 = scalar_select %p485, %s30, 3
        %s487 = smul.addr %s486, 4
        %s488 = smul.addr %s487, 4
        %s489 = scalar_lea.vmem %s3, %s488
        %p490 = scmp.lt.s32.totalorder %s30, 3
        %s491 = scalar_select %p490, %s30, 3
        %s492 = scalar_lea.vmem %s4, %s491
        %p493 = scmp.lt.s32.totalorder %s30, 3
        %s494 = scalar_select %p493, %s30, 3
        %s495 = smul.addr %s494, 4
        %s496 = scalar_lea.vmem %s5, %s495
        %s497 = smul.u32 2, %s29
        %p499 = scmp.eq.s32.totalorder %s30, 0
        // Predicated region
        $region73: #{tpu_custom_call.1} parent=71 // pred_check
          %p500 = pneg %p499
        $region74: #{tpu_custom_call.1} parent=71 // pred_check_branch
          %502 = sbr.rel (%p500) target = $region76
        $region75: #{tpu_custom_call.1} parent=71 // pred_region
          %v503 = vld [vmem:[%s483] sm:$0xff]
          %v504 = vld [vmem:[%s483 + $0x8] sm:$0xff]
          %v505 = vld [vmem:[%s1] sm:$0x1]
          %v506 = vld [vmem:[%s2] sm:$0x1]
          %vm507 = vcmask 261120
          %v508 = vsel %vm507, %v503, 0.0
          %509 = vadd.xlane.f32.xlu0 %v508
          %v510 = vpop.xlane.xlu0 %509
          %v511 = vsel %vm507, %v504, 0.0
          %512 = vadd.xlane.f32.xlu0 %v511
          %v513 = vpop.xlane.xlu0 %512
          %v514 = vrcp.pop 32.0
          %v515 = vmul.f32 32.0, %v514
          %v516 = vsub.f32 1.0, %v515
          %v517 = vmul.f32 %v514, %v516
          %v518 = vadd.f32 %v514, %v517
          %vm519 = vweird.f32 %v514
          %v520 = vsel %vm519, %v514, %v518
          %v521 = vmul.f32 %v510, %v520
          %v522 = vmul.f32 %v513, %v520
          %v523 = vsub.f32 %v503, %v521
          %v524 = vsub.f32 %v504, %v522
          %v525 = vmul.f32 %v523, %v523
          %v526 = vmul.f32 %v524, %v524
          %v527 = vsel %vm507, %v525, 0.0
          %528 = vadd.xlane.f32.xlu0 %v527
          %v529 = vpop.xlane.xlu0 %528
          %v530 = vsel %vm507, %v526, 0.0
          %531 = vadd.xlane.f32.xlu0 %v530
          %v532 = vpop.xlane.xlu0 %531
          %v533 = vmul.f32 %v529, %v520
          %v534 = vmul.f32 %v532, %v520
          %v535 = vadd.f32 %v533, 1e-05
          %v536 = vadd.f32 %v534, 1e-05
          %v537 = vrsqrt.pop %v535
          %v538 = vmul.f32 %v537, %v535
          %v539 = vmul.f32 %v538, %v537
          %v540 = vmul.f32 0.5, %v539
          %v541 = vsub.f32 1.5, %v540
          %v542 = vmul.f32 %v537, %v541
          %vm543 = vweird.f32 %v535
          %vm544 = vweird.f32 %v537
          %vm545 = vmor %vm543, %vm544
          %v546 = vsel %vm545, %v537, %v542
          %v547 = vrsqrt.pop %v536
          %v548 = vmul.f32 %v547, %v536
          %v549 = vmul.f32 %v548, %v547
          %v550 = vmul.f32 0.5, %v549
          %v551 = vsub.f32 1.5, %v550
          %v552 = vmul.f32 %v547, %v551
          %vm553 = vweird.f32 %v536
          %vm554 = vweird.f32 %v547
          %vm555 = vmor %vm553, %vm554
          %v556 = vsel %vm555, %v547, %v552
          %v557 = vmul.f32 %v523, %v546
          %v558 = vmul.f32 %v524, %v556
          %v560 = vperm.slane %v505, 0
          %v562 = vmul.f32 %v557, %v560
          %v563 = vmul.f32 %v558, %v560
          %v565 = vperm.slane %v506, 0
          %v567 = vadd.f32 %v562, %v565
          %v568 = vadd.f32 %v563, %v565
          %v569 = vpack.c.bf16 %v567, %v567
          %v570 = vpack.c.bf16 %v568, %v568
          %vm571 = vcmask 257024
          %572 = vst.msk [vmem:[#allocation2] sm:$0xf] %vm571, %v569
          %573 = vst.msk [vmem:[#allocation2 + $0x4] sm:$0xf] %vm571, %v570
          %574 = vst.msk [vmem:[#allocation3] sm:$0xff] %vm507, 0.0
          %575 = vst.msk [vmem:[#allocation3 + $0x8] sm:$0xff] %vm507, 0.0
        $region76: #{tpu_custom_call.1} parent=71 // pred_fallthru
          _
        %v576 = vld [vmem:[#allocation2] sm:$0xf]
        %v577 = vld [vmem:[#allocation2 + $0x4] sm:$0xf]
        %v578 = vld [vmem:[%s489] sm:$0xf]
        %v579 = vld [vmem:[%s489 + $0x4] sm:$0xf]
        %v580 = vld [vmem:[%s489 + $0x8] sm:$0xf]
        %v581 = vld [vmem:[%s489 + $0xc] sm:$0xf]
        %v582 = vld [vmem:[%s492] sm:$0x1]
        %v584 = vperm.slane %v582, 0
        %v588 = vunpack.c.l.b16 %v576
        %v589 = vunpack.c.l.b16 %v577
        %v590 = vpack.c.b16 %v589, %v588
        %v595 = vunpack.c.l.b16 %v578
        %v596 = vunpack.c.l.b16 %v579
        %v597 = vunpack.c.l.b16 %v580
        %v598 = vunpack.c.l.b16 %v581
        %v599 = vpack.c.b16 %v596, %v595
        %v600 = vpack.c.b16 %v598, %v597
        %vm603 = vcmask 261120
        %v605 = vsel %vm603, %v590, 0
        %607 = vmatpush.bf16.msra.mxu0 0
        %608 = vmatpush.bf16.msra.mxu0 0
        %609 = vmatpush.bf16.msra.mxu0 0
        %610 = vmatpush.bf16.msra.mxu0 0
        %611 = vmatpush.bf16.msra.mxu0 0
        %612 = vmatpush.bf16.msra.mxu0 0
        %613 = vmatpush.bf16.msra.mxu0 %v600
        %614 = vmatpush.bf16.msra.mxu0 %v599
        %615 = vmatmul.bf16.gmra.mxu0 %v605
        %v616 = vpop.f32.mrf.mxu0
        %v617 = vadd.f32 %v584, %v616
        %v618 = vpop.f32.mrf.mxu0
        %v619 = vadd.f32 %v584, %v618
        %620 = vdwg.mxu0
        %v621 = vmul.f32 %v617, 0.35355338
        %v622 = vmul.f32 %v619, 0.35355338
        %v623 = vpack.c.bf16 %v621, %v621
        %v624 = vpack.c.bf16 %v622, %v622
        %v625 = vpack.c.bf16 %v617, %v617
        %v626 = vpack.c.bf16 %v619, %v619
        %v628 = vunpack.c.l.b16 %v625
        %v629 = vpack.c.b16 %v628, %v628
        %630 = vrot.lane.b32.xlu0 %v629, 120
        %v631 = vpop.permute.xlu0 %630
        %vm632 = vcmask 64512
        %v634 = vsel %vm632, %v623, 0
        %v637 = vsel %vm632, %v631, 0
        %639 = vmatpush.bf16.xpose.msra.mxu0 0
        %640 = vmatpush.bf16.xpose.msra.mxu0 0
        %641 = vmatpush.bf16.xpose.msra.mxu0 0
        %642 = vmatpush.bf16.xpose.msra.mxu0 0
        %643 = vmatpush.bf16.xpose.msra.mxu0 0
        %644 = vmatpush.bf16.xpose.msra.mxu0 0
        %645 = vmatpush.bf16.xpose.msra.mxu0 0
        %646 = vmatpush.bf16.xpose.msra.mxu0 %v637
        %647 = vmatmul.bf16.gmra.mxu0 %v634
        %v648 = vpop.f32.mrf.mxu0
        %v649 = vadd.f32 0.0, %v648
        %v650 = vpop.f32.mrf.mxu0
        %651 = vdwg.mxu0
        %v653 = vunpack.c.l.b16 %v626
        %v654 = vpack.c.b16 %v653, %v653
        %655 = vrot.lane.b32.xlu0 %v654, 120
        %v656 = vpop.permute.xlu0 %655
        %v658 = vsel %vm632, %v624, 0
        %v661 = vsel %vm632, %v656, 0
        %663 = vmatpush.bf16.xpose.msra.mxu0 0
        %664 = vmatpush.bf16.xpose.msra.mxu0 0
        %665 = vmatpush.bf16.xpose.msra.mxu0 0
        %666 = vmatpush.bf16.xpose.msra.mxu0 0
        %667 = vmatpush.bf16.xpose.msra.mxu0 0
        %668 = vmatpush.bf16.xpose.msra.mxu0 0
        %669 = vmatpush.bf16.xpose.msra.mxu0 0
        %670 = vmatpush.bf16.xpose.msra.mxu0 %v661
        %671 = vmatmul.bf16.gmra.mxu0 %v658
        %v672 = vpop.f32.mrf.mxu0
        %v673 = vadd.f32 0.0, %v672
        %v674 = vpop.f32.mrf.mxu0
        %675 = vdwg.mxu0
        %v676 = vsel %vm632, %v649, -inf
        %677 = vmax.xlane.f32.xlu0 %v676
        %v678 = vpop.xlane.xlu0 %677
        %v679 = vsel %vm632, %v673, -inf
        %680 = vmax.xlane.f32.xlu0 %v679
        %v681 = vpop.xlane.xlu0 %680
        %v682 = vsub.f32 %v649, %v678
        %v683 = vsub.f32 %v673, %v681
        %v684 = vmul.f32 %v682, 1.442695
        %v685 = vpow.pop %v684
        %v686 = vmul.f32 %v683, 1.442695
        %v687 = vpow.pop %v686
        %v688 = vsel %vm632, %v685, 0.0
        %689 = vadd.xlane.f32.xlu0 %v688
        %v690 = vpop.xlane.xlu0 %689
        %v691 = vsel %vm632, %v687, 0.0
        %692 = vadd.xlane.f32.xlu0 %v691
        %v693 = vpop.xlane.xlu0 %692
        %v694 = vrcp.pop %v690
        %v695 = vrcp.pop %v693
        %v696 = vmul.f32 %v685, %v694
        %v697 = vmul.f32 %v687, %v695
        %v698 = vpack.c.bf16 %v696, %v696
        %v699 = vpack.c.bf16 %v697, %v697
        %700 = vrot.lane.b32.xlu0 %v629, 112
        %v701 = vpop.permute.xlu0 %700
        %v703 = vsel %vm632, %v698, 0
        %vm705 = vcmask 1043456
        %v707 = vsel %vm705, %v701, 0
        %709 = vmatpush.bf16.msra.mxu0 0
        %710 = vmatpush.bf16.msra.mxu0 0
        %711 = vmatpush.bf16.msra.mxu0 0
        %712 = vmatpush.bf16.msra.mxu0 0
        %713 = vmatpush.bf16.msra.mxu0 0
        %714 = vmatpush.bf16.msra.mxu0 0
        %715 = vmatpush.bf16.msra.mxu0 0
        %716 = vmatpush.bf16.msra.mxu0 %v707
        %717 = vmatmul.bf16.gmra.mxu0 %v703
        %v718 = vpop.f32.mrf.mxu0
        %v719 = vadd.f32 0.0, %v718
        %v720 = vpop.f32.mrf.mxu0
        %721 = vdwg.mxu0
        %722 = vrot.lane.b32.xlu0 %v654, 112
        %v723 = vpop.permute.xlu0 %722
        %v725 = vsel %vm632, %v699, 0
        %v728 = vsel %vm705, %v723, 0
        %730 = vmatpush.bf16.msra.mxu0 0
        %731 = vmatpush.bf16.msra.mxu0 0
        %732 = vmatpush.bf16.msra.mxu0 0
        %733 = vmatpush.bf16.msra.mxu0 0
        %734 = vmatpush.bf16.msra.mxu0 0
        %735 = vmatpush.bf16.msra.mxu0 0
        %736 = vmatpush.bf16.msra.mxu0 0
        %737 = vmatpush.bf16.msra.mxu0 %v728
        %738 = vmatmul.bf16.gmra.mxu0 %v725
        %v739 = vpop.f32.mrf.mxu0
        %v740 = vadd.f32 0.0, %v739
        %v741 = vpop.f32.mrf.mxu0
        %742 = vdwg.mxu0
        %v743 = vld [vmem:[#allocation3] sm:$0xff]
        %v744 = vld [vmem:[#allocation3 + $0x8] sm:$0xff]
        %v745 = vpack.c.bf16 %v740, %v719
        %v746 = vld [vmem:[%s496] sm:$0xf]
        %v748 = vsel %vm632, %v745, 0
        %v751 = vsel %vm705, %v746, 0
        %753 = vmatpush.bf16.msra.mxu0 0
        %754 = vmatpush.bf16.msra.mxu0 0
        %755 = vmatpush.bf16.msra.mxu0 0
        %756 = vmatpush.bf16.msra.mxu0 0
        %757 = vmatpush.bf16.msra.mxu0 0
        %758 = vmatpush.bf16.msra.mxu0 0
        %759 = vmatpush.bf16.msra.mxu0 0
        %760 = vmatpush.bf16.msra.mxu0 %v751
        %761 = vmatmul.bf16.gmra.mxu0 %v748
        %v762 = vpop.f32.mrf.mxu0
        %v763 = vadd.f32 0.0, %v762
        %v764 = vpop.f32.mrf.mxu0
        %v765 = vadd.f32 0.0, %v764
        %766 = vdwg.mxu0
        %v767 = vadd.f32 %v743, %v763
        %v768 = vadd.f32 %v744, %v765
        %769 = vst.msk [vmem:[#allocation3] sm:$0xff] %vm603, %v767
        %770 = vst.msk [vmem:[#allocation3 + $0x8] sm:$0xff] %vm603, %v768
        %p771 = scmp.eq.s32.totalorder %s30, 3
        // Predicated region
        $region77: #{tpu_custom_call.1} parent=71 // pred_check
          %p772 = pneg %p771
        $region78: #{tpu_custom_call.1} parent=71 // pred_check_branch
          %774 = sbr.rel (%p772) target = $region80
        $region79: #{tpu_custom_call.1} parent=71 // pred_region
          %v775 = vld [vmem:[%s483] sm:$0xff]
          %v776 = vld [vmem:[%s483 + $0x8] sm:$0xff]
          %v777 = vld [vmem:[#allocation3] sm:$0xff]
          %v778 = vld [vmem:[#allocation3 + $0x8] sm:$0xff]
          %v779 = vadd.f32 %v775, %v777
          %v780 = vadd.f32 %v776, %v778
          %v781 = vld [vmem:[%s6] sm:$0x1]
          %v783 = vperm.slane %v781, 0
          %v785 = vadd.f32 %v779, %v783
          %v786 = vadd.f32 %v780, %v783
          %v787 = vld [vmem:[%s7] sm:$0x1]
          %v788 = vld [vmem:[%s8] sm:$0x1]
          %v789 = vsel %vm603, %v785, 0.0
          %790 = vadd.xlane.f32.xlu0 %v789
          %v791 = vpop.xlane.xlu0 %790
          %v792 = vsel %vm603, %v786, 0.0
          %793 = vadd.xlane.f32.xlu0 %v792
          %v794 = vpop.xlane.xlu0 %793
          %v795 = vrcp.pop 32.0
          %v796 = vmul.f32 32.0, %v795
          %v797 = vsub.f32 1.0, %v796
          %v798 = vmul.f32 %v795, %v797
          %v799 = vadd.f32 %v795, %v798
          %vm800 = vweird.f32 %v795
          %v801 = vsel %vm800, %v795, %v799
          %v802 = vmul.f32 %v791, %v801
          %v803 = vmul.f32 %v794, %v801
          %v804 = vsub.f32 %v785, %v802
          %v805 = vsub.f32 %v786, %v803
          %v806 = vmul.f32 %v804, %v804
          %v807 = vmul.f32 %v805, %v805
          %v808 = vsel %vm603, %v806, 0.0
          %809 = vadd.xlane.f32.xlu0 %v808
          %v810 = vpop.xlane.xlu0 %809
          %v811 = vsel %vm603, %v807, 0.0
          %812 = vadd.xlane.f32.xlu0 %v811
          %v813 = vpop.xlane.xlu0 %812
          %v814 = vmul.f32 %v810, %v801
          %v815 = vmul.f32 %v813, %v801
          %v816 = vadd.f32 %v814, 1e-05
          %v817 = vadd.f32 %v815, 1e-05
          %v818 = vrsqrt.pop %v816
          %v819 = vmul.f32 %v818, %v816
          %v820 = vmul.f32 %v819, %v818
          %v821 = vmul.f32 0.5, %v820
          %v822 = vsub.f32 1.5, %v821
          %v823 = vmul.f32 %v818, %v822
          %vm824 = vweird.f32 %v816
          %vm825 = vweird.f32 %v818
          %vm826 = vmor %vm824, %vm825
          %v827 = vsel %vm826, %v818, %v823
          %v828 = vrsqrt.pop %v817
          %v829 = vmul.f32 %v828, %v817
          %v830 = vmul.f32 %v829, %v828
          %v831 = vmul.f32 0.5, %v830
          %v832 = vsub.f32 1.5, %v831
          %v833 = vmul.f32 %v828, %v832
          %vm834 = vweird.f32 %v817
          %vm835 = vweird.f32 %v828
          %vm836 = vmor %vm834, %vm835
          %v837 = vsel %vm836, %v828, %v833
          %v838 = vmul.f32 %v804, %v827
          %v839 = vmul.f32 %v805, %v837
          %v841 = vperm.slane %v787, 0
          %v843 = vmul.f32 %v838, %v841
          %v844 = vmul.f32 %v839, %v841
          %v846 = vperm.slane %v788, 0
          %v848 = vadd.f32 %v843, %v846
          %v849 = vadd.f32 %v844, %v846
          %v850 = vpack.c.bf16 %v849, %v848
          %v851 = vld [vmem:[%s9] sm:$0xf]
          %v852 = vld [vmem:[%s9 + $0x4] sm:$0xf]
          %v853 = vld [vmem:[%s9 + $0x8] sm:$0xf]
          %v854 = vld [vmem:[%s9 + $0xc] sm:$0xf]
          %v855 = vld [vmem:[%s10] sm:$0x1]
          %v857 = vperm.slane %v855, 0
          %v863 = vunpack.c.l.b16 %v851
          %v864 = vunpack.c.l.b16 %v852
          %v865 = vunpack.c.l.b16 %v853
          %v866 = vunpack.c.l.b16 %v854
          %v867 = vpack.c.b16 %v864, %v863
          %v868 = vpack.c.b16 %v866, %v865
          %v872 = vsel %vm603, %v850, 0
          %874 = vmatpush.bf16.msra.mxu0 0
          %875 = vmatpush.bf16.msra.mxu0 0
          %876 = vmatpush.bf16.msra.mxu0 0
          %877 = vmatpush.bf16.msra.mxu0 0
          %878 = vmatpush.bf16.msra.mxu0 0
          %879 = vmatpush.bf16.msra.mxu0 0
          %880 = vmatpush.bf16.msra.mxu0 %v868
          %881 = vmatpush.bf16.msra.mxu0 %v867
          %882 = vmatmul.bf16.gmra.mxu0 %v872
          %v883 = vpop.f32.mrf.mxu0
          %v884 = vadd.f32 %v857, %v883
          %v885 = vpop.f32.mrf.mxu0
          %v886 = vadd.f32 %v857, %v885
          %887 = vdwg.mxu0
          %v888 = vmax.f32 %v884, 0.0
          %v889 = vmax.f32 %v886, 0.0
          %v890 = vpack.c.bf16 %v889, %v888
          %v891 = vld [vmem:[%s11] sm:$0xf]
          %v892 = vld [vmem:[%s11 + $0x4] sm:$0xf]
          %v893 = vld [vmem:[%s11 + $0x8] sm:$0xf]
          %v894 = vld [vmem:[%s11 + $0xc] sm:$0xf]
          %v895 = vld [vmem:[%s11 + $0x10] sm:$0xf]
          %v896 = vld [vmem:[%s11 + $0x14] sm:$0xf]
          %v897 = vld [vmem:[%s11 + $0x18] sm:$0xf]
          %v898 = vld [vmem:[%s11 + $0x1c] sm:$0xf]
          %v899 = vld [vmem:[%s12] sm:$0x1]
          %v901 = vperm.slane %v899, 0
          %v911 = vunpack.c.l.b16 %v891
          %v912 = vunpack.c.l.b16 %v892
          %v913 = vunpack.c.l.b16 %v893
          %v914 = vunpack.c.l.b16 %v894
          %v915 = vunpack.c.l.b16 %v895
          %v916 = vunpack.c.l.b16 %v896
          %v917 = vunpack.c.l.b16 %v897
          %v918 = vunpack.c.l.b16 %v898
          %v919 = vpack.c.b16 %v912, %v911
          %v920 = vpack.c.b16 %v914, %v913
          %v921 = vpack.c.b16 %v916, %v915
          %v922 = vpack.c.b16 %v918, %v917
          %vm927 = vcmask 523264
          %v929 = vsel %vm927, %v890, 0
          %931 = vmatpush.bf16.msra.mxu0 0
          %932 = vmatpush.bf16.msra.mxu0 0
          %933 = vmatpush.bf16.msra.mxu0 0
          %934 = vmatpush.bf16.msra.mxu0 0
          %935 = vmatpush.bf16.msra.mxu0 %v922
          %936 = vmatpush.bf16.msra.mxu0 %v921
          %937 = vmatpush.bf16.msra.mxu0 %v920
          %938 = vmatpush.bf16.msra.mxu0 %v919
          %939 = vmatmul.bf16.gmra.mxu0 %v929
          %v940 = vpop.f32.mrf.mxu0
          %v941 = vadd.f32 %v901, %v940
          %v942 = vpop.f32.mrf.mxu0
          %v943 = vadd.f32 %v901, %v942
          %944 = vdwg.mxu0
          %v945 = vadd.f32 %v785, %v941
          %v946 = vadd.f32 %v786, %v943
          %947 = vst.msk [vmem:[#allocation4] sm:$0xff] %vm603, %v945
          %948 = vst.msk [vmem:[#allocation4 + $0x8] sm:$0xff] %vm603, %v946
        $region80: #{tpu_custom_call.1} parent=71 // pred_fallthru
          _
        // Predicated region
        $region81: #{tpu_custom_call.1} parent=71 // pred_check
          %p949 = pneg %p348
        $region82: #{tpu_custom_call.1} parent=71 // pred_check_branch
          %951 = sbr.rel (%p949) target = $region84
        $region83: #{tpu_custom_call.1} parent=71 // pred_region
          %s952 = smul.u32 2, %s29
          %954 = vsyncadd [#allocation5], 0
          %s955 = smul.addr %s952, 8
          %s956 = scalar_lea.hbm %s13, %s955
          %s957 = sshll.u32 [#allocation4], 4
          %s958 = int_to_ptr.vmem [resolvable:$true] %s957
          %s959 = sshll.u32 %s956, 4
          %s960 = int_to_ptr.hbm [resolvable:$true] %s959
          %965 = dma.vmem_to_hbm [thread:$0]  %s958, 256, %s960, [#allocation5], 128, 128, 8
        $region84: #{tpu_custom_call.1} parent=71 // pred_fallthru
          _
        // Predicated region
        $region85: #{tpu_custom_call.1} parent=71 // pred_check
          %p966 = pneg %p348
        $region86: #{tpu_custom_call.1} parent=71 // pred_check_branch
          %968 = sbr.rel (%p966) target = $region88
        $region87: #{tpu_custom_call.1} parent=71 // pred_region
          %970 = dma.done [#allocation5], 256
        $region88: #{tpu_custom_call.1} parent=71 // pred_fallthru
          _
      $region72: #{tpu_custom_call.1} parent=5 // pred_fallthru
        _
      %p971 = scmp.le.s32.totalorder 2, %s20
      // Predicated region
      $region89: #{tpu_custom_call.1} parent=5 // pred_check
        %p972 = pneg %p971
      $region90: #{tpu_custom_call.1} parent=5 // pred_check_branch
        %974 = sbr.rel (%p972) target = $region92
      $region91: #{tpu_custom_call.1} parent=5 // pred_region
        %s975 = ssub.s32 %s20, 2
      $region92: #{tpu_custom_call.1} parent=5 // pred_fallthru
        _
    $region6: #{tpu_custom_call.1} parent=1 // loop_footer
      %s24 = sadd.s32 1, %s20
    $region7: #{tpu_custom_call.1} parent=1 // loop_footer_branch
      %19 = sbr.rel target = $region3
    $region8: #{tpu_custom_call.1} parent=1 // loop_exit
      _
    %976 = vsyncpa [#allocation5], 1
    %s977 = scalar_lea.sflag [#allocation5], 1
    %978 = vsyncpa %s977, 1

</llo_original>
